<compile_context>
chip_gen: v6e
topology: v6e:2x2x1
jax: 0.10.0
libtpu: 0.0.40
codegen_flags: <defaults>
</compile_context>

<pallas_src>
import functools

import jax
import jax.numpy as jnp
from jax.experimental import pallas as pl
from jax.experimental.pallas import tpu as pltpu

# Per-block DMA budget in f32-equivalent bytes of the predictions tile
# (bt*T*D*4).  ~4 MiB keeps per-grid-step overhead (<~0.35 us) well under the
# DMA time on v5e/v6e/v7x while the total footprint stays inside the limit.
_TARGET_F32_TILE_BYTES = 4 * 1024 * 1024
# Explicit scoped-VMEM limit: < 64 MiB physical on v7x, ample headroom on
# v5e/v6e (128 MiB physical).
_VMEM_LIMIT_BYTES = 48 * 1024 * 1024
# In-kernel f32 temps per input row: x, x_next (rolled copy), per_elem.
_F32_TEMPS = 3


def _per_frame_loss(pred_ref, loss_type):
    """Returns [Bt, T, 1] feature-summed loss of (x[:, (t+1)%T] - x[:, t])."""
    x = pred_ref[...].astype(jnp.float32)               # cast per tile
    _, t, _ = x.shape
    # TODO(synk): roll sub-32-bit inputs in storage dtype (halves XLU bytes on
    # v6e/v7x) once packed-sublane static rotate is verified on all targets.
    x_next = pltpu.roll(x, shift=t - 1, axis=1)          # x_next[:, i] = x[:, (i+1) % t]
    diff = x_next - x
    per_elem = diff * diff if loss_type == "l2" else jnp.abs(diff)
    return jnp.sum(per_elem, axis=-1, keepdims=True)     # lane-reduce first


def _unmasked_kernel(pred_ref, out_ref, *, loss_type):
    per_frame = _per_frame_loss(pred_ref, loss_type)     # [Bt, T, 1]
    bt, t, _ = per_frame.shape
    t_idx = jax.lax.broadcasted_iota(jnp.int32, (bt, t, 1), 1)
    valid = (t_idx < (t - 1)).astype(jnp.float32)        # drop wrapped (T-1 -> 0) pair
    out_ref[...] = jnp.sum(per_frame * valid).reshape(1, 1, 1)


def _masked_kernel(pred_ref, pm_ref, out_ref, *, loss_type):
    per_frame = _per_frame_loss(pred_ref, loss_type)     # [Bt, T, 1]
    # pm already zeroes the wrapped pair (trailing zero column added in wrapper)
    # and zero-padded batch rows, so no iota / valid mask needed here.
    out_ref[...] = jnp.sum(per_frame * pm_ref[...]).reshape(1, 1, 1)


def _choose_batch_tile(B, T, D, block_b, itemsize):
    if block_b is not None:
        bt = max(1, int(block_b))
    else:
        bt = max(1, _TARGET_F32_TILE_BYTES // (T * D * 4))
    # Clamp so the real footprint (2x double-buffered input in storage dtype
    # + f32 temps from the cast/roll) stays comfortably inside the VMEM limit.
    per_row_bytes = T * D * (2 * itemsize + _F32_TEMPS * 4)
    max_bt = max(1, int(0.6 * _VMEM_LIMIT_BYTES) // per_row_bytes)
    return max(1, min(bt, max_bt, B))


def temporal_consistency_loss(predictions, mask=None, *, loss_type="l2",
                              reduction="mean", block_b=None):
    """JAX/Pallas equivalent of TemporalConsistencyLoss.forward.

    predictions: [B, T, D] array (any float dtype; streamed in storage dtype)
    mask:        optional [B, T] array (1 = valid frame, 0 = padded)
    returns:     scalar float32 loss
    """
    if loss_type not in ("l1", "l2"):
        raise ValueError(f"unsupported loss_type: {loss_type}")
    if reduction not in ("mean", "sum"):
        # TODO(synk): reduction='none' (per-element loss map) not wired up.
        raise ValueError(f"unsupported reduction: {reduction}")

    B, T, D = predictions.shape
    if T < 2:
        return jnp.asarray(0.0, jnp.float32)   # no frame pairs -> zero loss

    itemsize = predictions.dtype.itemsize
    bt = _choose_batch_tile(B, T, D, block_b, itemsize)
    nb = -(-B // bt)
    b_pad = nb * bt
    if b_pad != B:   # zero-padded rows contribute 0 to every partial sum
        predictions = jnp.pad(predictions, ((0, b_pad - B), (0, 0), (0, 0)))

    compiler_params = pltpu.CompilerParams(
        dimension_semantics=("parallel",),         # per-block partials -> shardable
        vmem_limit_bytes=_VMEM_LIMIT_BYTES,
    )
    cost = pl.CostEstimate(
        flops=3 * b_pad * T * D,
        transcendentals=0,
        bytes_accessed=b_pad * T * D * itemsize + b_pad * T * 4 + nb * 4,
    )
    # Per-block partial outputs: last two dims of the block (1, 1) equal the
    # full array extents, so no (8, 128) alignment concerns.
    out_shape = jax.ShapeDtypeStruct((nb, 1, 1), jnp.float32)
    out_spec = pl.BlockSpec((1, 1, 1), lambda i: (i, 0, 0))
    pred_spec = pl.BlockSpec((bt, T, D), lambda i: (i, 0, 0))

    if mask is None:
        partials = pl.pallas_call(
            functools.partial(_unmasked_kernel, loss_type=loss_type),
            out_shape=out_shape,
            grid=(nb,),
            in_specs=[pred_spec],
            out_specs=out_spec,
            compiler_params=compiler_params,
            cost_estimate=cost,
        )(predictions)
        num_s = jnp.sum(partials)
        if reduction == "sum":
            return num_s
        return num_s / jnp.float32(B * (T - 1) * D)   # compile-time denominator

    # Mask math hoisted to the wrapper: pm is the valid-pair mask (length T-1,
    # padded with a trailing zero so the in-kernel wrapped pair is killed),
    # and the denominator is computed here in plain JAX.
    mask_f = mask.astype(jnp.float32)
    pm = mask_f[:, 1:] * mask_f[:, :-1]                      # [B, T-1]
    den = jnp.sum(pm) * jnp.float32(D)
    pm = jnp.pad(pm, ((0, b_pad - B), (0, 1)))               # [B_pad, T]
    pm = pm[:, :, None]                                       # [B_pad, T, 1]

    partials = pl.pallas_call(
        functools.partial(_masked_kernel, loss_type=loss_type),
        out_shape=out_shape,
        grid=(nb,),
        in_specs=[pred_spec,
                  pl.BlockSpec((bt, T, 1), lambda i: (i, 0, 0))],
        out_specs=out_spec,
        compiler_params=compiler_params,
        cost_estimate=cost,
    )(predictions, pm)
    num_s = jnp.sum(partials)
    if reduction == "sum":
        return num_s
    return num_s / jnp.maximum(den, 1.0)


def _reference(predictions, mask=None, loss_type="l2"):
    x = predictions.astype(jnp.float32)
    diff = x[:, 1:, :] - x[:, :-1, :]
    per_elem = diff * diff if loss_type == "l2" else jnp.abs(diff)
    if mask is None:
        return jnp.mean(per_elem)
    m = mask.astype(jnp.float32)
    pm = m[:, 1:] * m[:, :-1]
    num = jnp.sum(per_elem * pm[:, :, None])
    den = jnp.maximum(jnp.sum(pm) * x.shape[-1], 1.0)
    return num / den


if __name__ == "__main__":
    key = jax.random.PRNGKey(0)
    k1, k2, k3, k4, k5 = jax.random.split(key, 5)

    # --- canonical small shapes: [B, T, D] = [2, 8, 32] (single block) ---
    B, T, D = 2, 8, 32
    preds = jax.random.normal(k1, (B, T, D), dtype=jnp.float32)
    mask = jnp.ones((B, T), dtype=jnp.float32).at[1, 5:].set(0.0)

    out_m = temporal_consistency_loss(preds, mask, loss_type="l2")
    out_u = temporal_consistency_loss(preds, None, loss_type="l2")
    out_l1 = temporal_consistency_loss(preds, mask, loss_type="l1")
    jax.block_until_ready((out_m, out_u, out_l1))
    assert jnp.allclose(out_m, _reference(preds, mask, "l2"), rtol=1e-5, atol=1e-5)
    assert jnp.allclose(out_u, _reference(preds, None, "l2"), rtol=1e-5, atol=1e-5)
    assert jnp.allclose(out_l1, _reference(preds, mask, "l1"), rtol=1e-5, atol=1e-5)

    # --- multi-block parallel grid + batch padding (bt=3 -> 7 blocks, 1 pad row) ---
    B2, T2, D2 = 20, 16, 128
    preds2 = jax.random.normal(k2, (B2, T2, D2), dtype=jnp.float32)
    mask2 = (jax.random.uniform(k3, (B2, T2)) > 0.3).astype(jnp.float32)
    out2_m = temporal_consistency_loss(preds2, mask2, block_b=3)
    out2_u = temporal_consistency_loss(preds2, None, block_b=3)
    jax.block_until_ready((out2_m, out2_u))
    assert jnp.allclose(out2_m, _reference(preds2, mask2, "l2"), rtol=1e-5, atol=1e-5)
    assert jnp.allclose(out2_u, _reference(preds2, None, "l2"), rtol=1e-5, atol=1e-5)

    # --- bf16 storage dtype streamed directly (cast to f32 per tile in-kernel) ---
    preds3 = jax.random.normal(k4, (4, 8, 64), dtype=jnp.float32).astype(jnp.bfloat16)
    mask3 = (jax.random.uniform(k5, (4, 8)) > 0.2).astype(jnp.float32)
    out3 = temporal_consistency_loss(preds3, mask3)
    jax.block_until_ready(out3)
    assert jnp.allclose(out3, _reference(preds3, mask3, "l2"), rtol=1e-4, atol=1e-5)

    print("KERNEL_OK")
</pallas_src>

<mosaic_0001>
module attributes {stable_mosaic.version = 11 : i64} {
  func.func @_masked_kernel(%arg0: i32, %arg1: memref<2x8x32xf32, #tpu.memory_space<vmem>>, %arg2: memref<2x8x1xf32, #tpu.memory_space<vmem>>, %arg3: memref<1x1x1xf32, #tpu.memory_space<vmem>>) attributes {dimension_semantics = [#tpu.dimension_semantics<parallel>], iteration_bounds = array<i64: 1>, scalar_prefetch = 0 : i64, scratch_operands = 0 : i64, tpu.core_type = #tpu.core_type<tc>, window_params = [{transform_indices = @transform_0, window_bounds = array<i64: 2, 8, 32>}, {transform_indices = @transform_1, window_bounds = array<i64: 2, 8, 1>}, {transform_indices = @transform_2, window_bounds = array<i64: 1, 1, 1>}]} {
    %c0 = arith.constant 0 : index
    %c0_0 = arith.constant 0 : index
    %c0_1 = arith.constant 0 : index
    %0 = vector.load %arg1[%c0, %c0_0, %c0_1] : memref<2x8x32xf32, #tpu.memory_space<vmem>>, vector<2x8x32xf32>
    %c7_i32 = arith.constant 7 : i32
    %1 = tpu.dynamic_rotate %0 by %c7_i32 dim 1 : vector<2x8x32xf32>, i32 -> vector<2x8x32xf32>
    %2 = arith.subf %1, %0 : vector<2x8x32xf32>
    %3 = arith.mulf %2, %2 : vector<2x8x32xf32>
    %cst = arith.constant dense<0.000000e+00> : vector<2x8xf32>
    %4 = vector.multi_reduction <add>, %3, %cst [2] : vector<2x8x32xf32> to vector<2x8xf32>
    %5 = vector.shape_cast %4 : vector<2x8xf32> to vector<2x8x1xf32>
    %c0_2 = arith.constant 0 : index
    %c0_3 = arith.constant 0 : index
    %c0_4 = arith.constant 0 : index
    %6 = vector.load %arg2[%c0_2, %c0_3, %c0_4] : memref<2x8x1xf32, #tpu.memory_space<vmem>>, vector<2x8x1xf32>
    %7 = arith.mulf %5, %6 : vector<2x8x1xf32>
    %8 = vector.shape_cast %7 : vector<2x8x1xf32> to vector<1x2x8x1xf32>
    %cst_5 = arith.constant dense<0.000000e+00> : vector<1xf32>
    %9 = vector.multi_reduction <add>, %8, %cst_5 [1, 2, 3] : vector<1x2x8x1xf32> to vector<1xf32>
    %10 = vector.shape_cast %9 : vector<1xf32> to vector<1x1x1x1xf32>
    %11 = vector.extract %10[0, 0, 0, 0] : f32 from vector<1x1x1x1xf32>
    %12 = vector.broadcast %11 : f32 to vector<1x1x1xf32>
    %c0_6 = arith.constant 0 : index
    %c0_7 = arith.constant 0 : index
    %c0_8 = arith.constant 0 : index
    %13 = vector.load %arg3[%c0_6, %c0_7, %c0_8] : memref<1x1x1xf32, #tpu.memory_space<vmem>>, vector<1x1x1xf32>
    tpu.vector_store %arg3[%c0_6, %c0_7, %c0_8], %12 {strides = array<i32>} : memref<1x1x1xf32, #tpu.memory_space<vmem>>, vector<1x1x1xf32>,
    return
  }
  func.func @transform_0(%arg0: i32) -> (i32, i32, i32) {
    %c0_i32 = arith.constant 0 : i32
    %c0_i32_0 = arith.constant 0 : i32
    %c0_i32_1 = arith.constant 0 : i32
    return %arg0, %c0_i32, %c0_i32_0 : i32, i32, i32
  }
  func.func @transform_1(%arg0: i32) -> (i32, i32, i32) {
    %c0_i32 = arith.constant 0 : i32
    %c0_i32_0 = arith.constant 0 : i32
    %c0_i32_1 = arith.constant 0 : i32
    return %arg0, %c0_i32, %c0_i32_0 : i32, i32, i32
  }
  func.func @transform_2(%arg0: i32) -> (i32, i32, i32) {
    %c0_i32 = arith.constant 0 : i32
    %c0_i32_0 = arith.constant 0 : i32
    %c0_i32_1 = arith.constant 0 : i32
    return %arg0, %c0_i32, %c0_i32_0 : i32, i32, i32
  }
}

</mosaic_0001>

<llo_original>
// kernel: tpu_custom_call.1
$region0: #{tpu_custom_call.1}
  #allocation0 [shape = 'u32[]', space=smem, size = 0x4, offset = 0x4, fixed_abs, tag = 'smem constant byte address 0x4 - core index']
  #allocation1 [shape = 'u32[144,128]{1,0:T(1,128)}', space=vmem, size = 0x12000, scoped, tag = 'internal scratch']
  %s0 = inlined_call_operand.vmem [shape: f32[2,8,32], index: 0, kind: input, shape index: {}]
  %s1 = inlined_call_operand.vmem [shape: f32[2,8,1], index: 1, kind: input, shape index: {}]
  %s2 = inlined_call_operand.hbm [shape: f32[1,1,1], index: 2, kind: output, shape index: {}]
  %s3 = sld [smem:[#allocation0]]
  $region18: #{tpu_custom_call.1} parent=0
    _
  %s5 = ssub.s32 1, %s3
  %s6 = scalar_select 0, %s5, %s3
  $region1: #{tpu_custom_call.1} parent=0
    #allocation2 [shape = 'u8[512]{0}', space=vmem, size = 0x400, scoped, tag = 'output window, operand 0, single buffered']
    #allocation3 [shape = 's32[1]{0}', space=sflag, size = 0x4, scoped, tag = 'scoped memory for tpu_custom_call.1']
    %7 = vsyncpa [#allocation3], 0
    // Predicated region
    $region2: #{tpu_custom_call.1} parent=1 // pred_check
      _
    $region3: #{tpu_custom_call.1} parent=1 // pred_check_branch
      %9 = sbr.rel (0) target = $region5
    $region4: #{tpu_custom_call.1} parent=1 // pred_region
      _
    $region5: #{tpu_custom_call.1} parent=1 // pred_fallthru
      _
    // Predicated region
    $region6: #{tpu_custom_call.1} parent=1 // pred_check
      _
    $region7: #{tpu_custom_call.1} parent=1 // pred_check_branch
      %11 = sbr.rel (0) target = $region9
    $region8: #{tpu_custom_call.1} parent=1 // pred_region
      _
    $region9: #{tpu_custom_call.1} parent=1 // pred_fallthru
      _
    %v12 = vld [vmem:[%s0] sm:$0xff]
    %v13 = vld [vmem:[%s0 + $0x8] sm:$0xff]
    %v14 = vrot.slane %v12, 1
    %v15 = vrot.slane %v13, 1
    %v16 = vsub.f32 %v14, %v12
    %v17 = vsub.f32 %v15, %v13
    %v18 = vmul.f32 %v16, %v16
    %v19 = vmul.f32 %v17, %v17
    %vm20 = vcmask 261120
    %v21 = vsel %vm20, %v18, 0.0
    %22 = vadd.xlane.f32.xlu0 %v21
    %v23 = vpop.xlane.xlu0 %22
    %v24 = vsel %vm20, %v19, 0.0
    %25 = vadd.xlane.f32.xlu0 %v24
    %v26 = vpop.xlane.xlu0 %25
    %v27 = vld [vmem:[%s1] sm:$0xff]
    %v28 = vld [vmem:[%s1 + $0x8] sm:$0xff]
    %v29 = vmul.f32 %v23, %v27
    %v30 = vmul.f32 %v26, %v28
    %vm31 = vcmask 7168
    %v32 = vsel %vm31, %v29, 0.0
    %v33 = vsel %vm31, %v30, 0.0
    %v34 = vadd.f32 %v32, %v33
    %35 = vadd.xlane.f32.xlu0 %v34
    %v36 = vpop.xlane.xlu0 %35
    %v37 = vrot.slane %v36, 4
    %v38 = vadd.f32 %v36, %v37
    %v39 = vrot.slane %v38, 2
    %v40 = vadd.f32 %v38, %v39
    %v41 = vrot.slane %v40, 1
    %v42 = vadd.f32 %v40, %v41
    %s43 = vtos %v42
    %v44 = vstv %s43
    %vm45 = vcmask 0
    %46 = vst.msk [vmem:[#allocation2] sm:$0x1] %vm45, %v44
    // Predicated region
    $region10: #{tpu_custom_call.1} parent=1 // pred_check
      _
    $region11: #{tpu_custom_call.1} parent=1 // pred_check_branch
      %48 = sbr.rel (0) target = $region13
    $region12: #{tpu_custom_call.1} parent=1 // pred_region
      %s50 = ssub.s32 16, 16
      %51 = vsyncadd [#allocation3], %s50
      %s53 = sshll.u32 [#allocation2], 4
      %s54 = int_to_ptr.vmem [resolvable:$true] %s53
      %56 = dma.vmem_to_hbm [thread:$0]  %s54, 16, %s2, [#allocation3]
    $region13: #{tpu_custom_call.1} parent=1 // pred_fallthru
      _
    // Predicated region
    $region14: #{tpu_custom_call.1} parent=1 // pred_check
      _
    $region15: #{tpu_custom_call.1} parent=1 // pred_check_branch
      %58 = sbr.rel (0) target = $region17
    $region16: #{tpu_custom_call.1} parent=1 // pred_region
      %59 = dma.done [#allocation3], 16
    $region17: #{tpu_custom_call.1} parent=1 // pred_fallthru
      _
    %60 = vsyncpa [#allocation3], 1

</llo_original>
